<compile_context>
chip_gen: v6e
topology: v6e:2x2x1
jax: 0.10.0
libtpu: 0.0.40
codegen_flags: <defaults>
</compile_context>

<pallas_src>
from functools import partial

import jax
import jax.numpy as jnp
from jax.experimental import pallas as pl
from jax.experimental.pallas import tpu as pltpu


def _make_gcn_kernel(x_resident, tk):
    """Kernel factory; x_resident / tk are trace-time (static) parameters."""

    def kernel(a_t_ref, x_ref, dt_ref, w_ref, b_ref, o_ref, acc_ref):
        # a_t_ref : [TM, TK]            bf16  A_hat^T tile (rows=target, cols=source)
        # x_ref   : [TK, FinP] or [N, FinP] bf16  deg^-1/2-scaled source features
        # dt_ref  : [TM, 1]             f32   deg^-1/2 of target nodes
        # w_ref   : [FinP, FoutP]       bf16  W^T (padded)
        # b_ref   : [1, FoutP]          f32   bias (padded)
        # o_ref   : [TM, FoutP]         f32   output tile
        # acc_ref : [TM, FinP]          f32   VMEM accumulator (aggregated features)
        k = pl.program_id(1)

        @pl.when(k == 0)
        def _init():
            acc_ref[...] = jnp.zeros_like(acc_ref)

        if x_resident:
            start = pl.multiple_of(k * tk, 128)
            xs = x_ref[pl.ds(start, tk), :]
        else:
            xs = x_ref[...]

        # bf16 x bf16 MXU matmul, f32 accumulation.
        acc_ref[...] += jnp.dot(a_t_ref[...], xs, preferred_element_type=jnp.float32)

        @pl.when(k == pl.num_programs(1) - 1)
        def _finalize():
            agg = (acc_ref[...] * dt_ref[...]).astype(jnp.bfloat16)  # deg^-1/2 (target)
            out = jnp.dot(agg, w_ref[...],
                          preferred_element_type=jnp.float32) + b_ref[...]
            o_ref[...] = out.astype(o_ref.dtype)

    return kernel


def _round_up(v, m):
    return (v + m - 1) // m * m


def _pick_tile(n_pad, cap):
    t = max(128, min(int(cap), n_pad))
    t -= t % 128
    while n_pad % t:
        t -= 128
    return t


@partial(jax.jit, static_argnames=("tm_max", "tk_max"))
def global_layer(x, adj, weight_t, bias, *, tm_max=1024, tk_max=2048):
    """x: [N, F_in], adj: [N, N] (row=source, col=target), weight_t: [F_in, F_out]
    (= W^T), bias: [1, F_out] or [F_out].  Returns [N, F_out] f32."""
    n, fin = x.shape
    fout = weight_t.shape[1]

    n_pad = _round_up(n, 128)
    fin_p = _round_up(fin, 128)
    fout_p = _round_up(fout, 128)

    # ---- XLA-side prep (fused under jit): binarize + self loops, in-degree,
    #      transpose, pad, and fold deg^-1/2 into x (bf16). ----
    a_hat = jnp.logical_or(adj != 0, jnp.eye(n, dtype=jnp.bool_))
    deg = jnp.sum(a_hat, axis=0).astype(jnp.float32)          # in-degree, >= 1
    d_inv_sqrt = jax.lax.rsqrt(deg)

    # Transposed binary adjacency in bf16 (exact 0/1): no in-kernel transpose,
    # half the HBM/VMEM bytes for the N x N operand.
    a_hat_t = jnp.zeros((n_pad, n_pad), jnp.bfloat16).at[:n, :n].set(
        a_hat.T.astype(jnp.bfloat16))

    x_scaled = (x.astype(jnp.float32) * d_inv_sqrt[:, None]).astype(jnp.bfloat16)
    x_p = jnp.zeros((n_pad, fin_p), jnp.bfloat16).at[:n, :fin].set(x_scaled)

    w_p = jnp.zeros((fin_p, fout_p), jnp.bfloat16).at[:fin, :fout].set(
        weight_t.astype(jnp.bfloat16))
    b_p = jnp.zeros((1, fout_p), jnp.float32).at[:, :fout].set(
        jnp.reshape(bias, (1, -1)).astype(jnp.float32))
    dt_p = jnp.zeros((n_pad, 1), jnp.float32).at[:n, 0].set(d_inv_sqrt)   # pad -> 0

    # ---- Tile selection: big tiles (per-step overhead ~0.35 us), v7x-safe. ----
    # Keep grid_i >= 2 when possible so the "parallel" axis shards across v7x's 2 TCs.
    tm_cap = tm_max if n_pad < 256 else min(tm_max, n_pad // 2)
    tm = _pick_tile(n_pad, tm_cap)
    tk = _pick_tile(n_pad, tk_max)

    # Keep x fully VMEM-resident (single DMA) when it is cheap to do so.
    x_resident = (n_pad * fin_p * 2) <= (8 << 20)

    def footprint(tm_, tk_):
        a = 2 * tm_ * tk_ * 2                                   # A tile, double-buffered
        xb = n_pad * fin_p * 2 if x_resident else 2 * tk_ * fin_p * 2
        dt = 2 * tm_ * 128 * 4                                  # narrow block (lane-padded)
        w = 2 * fin_p * fout_p * 2
        b = 2 * 8 * fout_p * 4
        o = 2 * tm_ * fout_p * 4
        acc = tm_ * fin_p * 4
        return a + xb + dt + w + b + o + acc

    budget = 40 << 20                       # well under v7x's 64 MiB per-core VMEM
    while footprint(tm, tk) > budget and tk > 128:
        tk = _pick_tile(n_pad, tk - 128)
    while footprint(tm, tk) > budget and tm > 128:
        tm = _pick_tile(n_pad, tm - 128)

    grid = (n_pad // tm, n_pad // tk)
    vmem_limit = int(min(max(32 << 20, footprint(tm, tk) + (4 << 20)), 48 << 20))

    x_passes = 1 if x_resident else grid[0]
    cost = pl.CostEstimate(
        flops=2 * n_pad * n_pad * fin_p + 2 * n_pad * fin_p * fout_p,
        transcendentals=0,
        bytes_accessed=(n_pad * n_pad * 2                 # A_hat^T (bf16)
                        + x_passes * n_pad * fin_p * 2    # x (bf16, actual passes)
                        + n_pad * fout_p * 4              # out
                        + fin_p * fout_p * 2 + fout_p * 4 + n_pad * 4),
    )

    if x_resident:
        x_spec = pl.BlockSpec((n_pad, fin_p), lambda i, k: (0, 0))   # fetched once
    else:
        x_spec = pl.BlockSpec((tk, fin_p), lambda i, k: (k, 0))

    out_p = pl.pallas_call(
        _make_gcn_kernel(x_resident, tk),
        out_shape=jax.ShapeDtypeStruct((n_pad, fout_p), jnp.float32),
        grid_spec=pltpu.PrefetchScalarGridSpec(
            num_scalar_prefetch=0,
            grid=grid,
            in_specs=[
                pl.BlockSpec((tm, tk), lambda i, k: (i, k)),        # A_hat^T tile
                x_spec,                                             # scaled x (bf16)
                pl.BlockSpec((tm, 1), lambda i, k: (i, 0)),         # d^-1/2 (target)
                pl.BlockSpec((fin_p, fout_p), lambda i, k: (0, 0)), # W^T (bf16)
                pl.BlockSpec((1, fout_p), lambda i, k: (0, 0)),     # bias
            ],
            out_specs=pl.BlockSpec((tm, fout_p), lambda i, k: (i, 0)),
            scratch_shapes=[pltpu.VMEM((tm, fin_p), jnp.float32)],
        ),
        compiler_params=pltpu.CompilerParams(
            dimension_semantics=("parallel", "arbitrary"),
            vmem_limit_bytes=vmem_limit,
        ),
        cost_estimate=cost,
    )(a_hat_t, x_p, dt_p, w_p, b_p)

    return out_p[:n, :fout]


def _reference(x, adj, weight_t, bias):
    n = adj.shape[0]
    a_hat = jnp.maximum((adj != 0).astype(jnp.float32), jnp.eye(n, dtype=jnp.float32))
    deg = jnp.sum(a_hat, axis=0)
    dis = jax.lax.rsqrt(deg)
    agg = jnp.dot(a_hat.T, x * dis[:, None], precision=jax.lax.Precision.HIGHEST)
    return jnp.dot(dis[:, None] * agg, weight_t,
                   precision=jax.lax.Precision.HIGHEST) + jnp.reshape(bias, (1, -1))


if __name__ == "__main__":
    N, F_IN, F_OUT = 16, 8, 32

    key = jax.random.PRNGKey(0)
    kx, kadj, kw, kb = jax.random.split(key, 4)

    x = jax.random.normal(kx, (N, F_IN), dtype=jnp.float32)
    # Random sparse-ish adjacency; any nonzero entry -> edge (matches adj.nonzero()).
    adj = (jax.random.uniform(kadj, (N, N)) > 0.6).astype(jnp.float32)

    # GCNConv-style parameters (W passed pre-transposed as [F_in, F_out]).
    limit = jnp.sqrt(6.0 / (F_IN + F_OUT))
    weight_t = jax.random.uniform(kw, (F_IN, F_OUT), minval=-limit, maxval=limit,
                                  dtype=jnp.float32)
    bias = 0.1 * jax.random.normal(kb, (1, F_OUT), dtype=jnp.float32)

    out = jax.block_until_ready(global_layer(x, adj, weight_t, bias))
    ref = _reference(x, adj, weight_t, bias)

    assert out.shape == (N, F_OUT)
    # bf16 MXU path (f32 accumulation) -> small relative error vs full-f32 reference.
    assert jnp.allclose(out, ref, atol=2e-2, rtol=2e-2), float(jnp.max(jnp.abs(out - ref)))

    print("KERNEL_OK")
</pallas_src>

<mosaic_0001>
module attributes {stable_mosaic.version = 11 : i64} {
  func.func @kernel(%arg0: i32, %arg1: i32, %arg2: memref<128x128xbf16, #tpu.memory_space<vmem>>, %arg3: memref<128x128xbf16, #tpu.memory_space<vmem>>, %arg4: memref<128x1xf32, #tpu.memory_space<vmem>>, %arg5: memref<128x128xbf16, #tpu.memory_space<vmem>>, %arg6: memref<1x128xf32, #tpu.memory_space<vmem>>, %arg7: memref<128x128xf32, #tpu.memory_space<vmem>>, %arg8: memref<128x128xf32, #tpu.memory_space<vmem>>) attributes {dimension_semantics = [#tpu.dimension_semantics<parallel>, #tpu.dimension_semantics<arbitrary>], iteration_bounds = array<i64: 1, 1>, scalar_prefetch = 0 : i64, scratch_operands = 1 : i64, tpu.core_type = #tpu.core_type<tc>, window_params = [{transform_indices = @transform_0, window_bounds = array<i64: 128, 128>}, {pipeline_mode = #tpu.pipeline_mode<synchronous>, transform_indices = @transform_1, window_bounds = array<i64: 128, 128>}, {transform_indices = @transform_2, window_bounds = array<i64: 128, 1>}, {pipeline_mode = #tpu.pipeline_mode<synchronous>, transform_indices = @transform_3, window_bounds = array<i64: 128, 128>}, {pipeline_mode = #tpu.pipeline_mode<synchronous>, transform_indices = @transform_4, window_bounds = array<i64: 1, 128>}, {transform_indices = @transform_5, window_bounds = array<i64: 128, 128>}]} {
    %c0_i32 = arith.constant 0 : i32
    %0 = arith.cmpi eq, %arg1, %c0_i32 : i32
    %1 = arith.extui %0 : i1 to i32
    %c0_i32_0 = arith.constant 0 : i32
    %2 = arith.cmpi ne, %1, %c0_i32_0 : i32
    scf.if %2 {
      %cst_9 = arith.constant 0.000000e+00 : f32
      %15 = vector.broadcast %cst_9 : f32 to vector<128x128xf32>
      %c0_10 = arith.constant 0 : index
      %c0_11 = arith.constant 0 : index
      %16 = vector.load %arg8[%c0_10, %c0_11] : memref<128x128xf32, #tpu.memory_space<vmem>>, vector<128x128xf32>
      tpu.vector_store %arg8[%c0_10, %c0_11], %15 {strides = array<i32>} : memref<128x128xf32, #tpu.memory_space<vmem>>, vector<128x128xf32>,
    } else {
    }
    %c128_i32 = arith.constant 128 : i32
    %3 = arith.muli %arg1, %c128_i32 : i32
    %4 = tpu.assume_multiple %3, 128 : i32
    %5 = arith.index_cast %4 : i32 to index
    %c0 = arith.constant 0 : index
    %6 = vector.load %arg3[%5, %c0] : memref<128x128xbf16, #tpu.memory_space<vmem>>, vector<128x128xbf16>
    %c0_1 = arith.constant 0 : index
    %c0_2 = arith.constant 0 : index
    %7 = vector.load %arg8[%c0_1, %c0_2] : memref<128x128xf32, #tpu.memory_space<vmem>>, vector<128x128xf32>
    %c0_3 = arith.constant 0 : index
    %c0_4 = arith.constant 0 : index
    %8 = vector.load %arg2[%c0_3, %c0_4] : memref<128x128xbf16, #tpu.memory_space<vmem>>, vector<128x128xbf16>
    %cst = arith.constant dense<0.000000e+00> : vector<128x128xf32>
    %9 = tpu.matmul %8, %6, %cst {dimension_numbers = #tpu.dot_dimension_numbers<[1], [0], [0], [1], [0, 0, 1, 1], [], []>} : vector<128x128xbf16>, vector<128x128xbf16>, vector<128x128xf32> -> vector<128x128xf32>
    %10 = arith.addf %7, %9 : vector<128x128xf32>
    %c0_5 = arith.constant 0 : index
    %c0_6 = arith.constant 0 : index
    %11 = vector.load %arg8[%c0_5, %c0_6] : memref<128x128xf32, #tpu.memory_space<vmem>>, vector<128x128xf32>
    tpu.vector_store %arg8[%c0_5, %c0_6], %10 {strides = array<i32>} : memref<128x128xf32, #tpu.memory_space<vmem>>, vector<128x128xf32>,
    %c0_i32_7 = arith.constant 0 : i32
    %12 = arith.cmpi eq, %arg1, %c0_i32_7 : i32
    %13 = arith.extui %12 : i1 to i32
    %c0_i32_8 = arith.constant 0 : i32
    %14 = arith.cmpi ne, %13, %c0_i32_8 : i32
    scf.if %14 {
      %c0_9 = arith.constant 0 : index
      %c0_10 = arith.constant 0 : index
      %15 = vector.load %arg8[%c0_9, %c0_10] : memref<128x128xf32, #tpu.memory_space<vmem>>, vector<128x128xf32>
      %c0_11 = arith.constant 0 : index
      %c0_12 = arith.constant 0 : index
      %16 = vector.load %arg4[%c0_11, %c0_12] : memref<128x1xf32, #tpu.memory_space<vmem>>, vector<128x1xf32>
      %17 = vector.broadcast %16 : vector<128x1xf32> to vector<128x128xf32>
      %18 = arith.mulf %15, %17 : vector<128x128xf32>
      %19 = arith.truncf %18 : vector<128x128xf32> to vector<128x128xbf16>
      %c0_13 = arith.constant 0 : index
      %c0_14 = arith.constant 0 : index
      %20 = vector.load %arg5[%c0_13, %c0_14] : memref<128x128xbf16, #tpu.memory_space<vmem>>, vector<128x128xbf16>
      %cst_15 = arith.constant dense<0.000000e+00> : vector<128x128xf32>
      %21 = tpu.matmul %19, %20, %cst_15 {dimension_numbers = #tpu.dot_dimension_numbers<[1], [0], [0], [1], [0, 0, 1, 1], [], []>} : vector<128x128xbf16>, vector<128x128xbf16>, vector<128x128xf32> -> vector<128x128xf32>
      %c0_16 = arith.constant 0 : index
      %c0_17 = arith.constant 0 : index
      %22 = vector.load %arg6[%c0_16, %c0_17] : memref<1x128xf32, #tpu.memory_space<vmem>>, vector<1x128xf32>
      %23 = vector.broadcast %22 : vector<1x128xf32> to vector<128x128xf32>
      %24 = arith.addf %21, %23 : vector<128x128xf32>
      %c0_18 = arith.constant 0 : index
      %c0_19 = arith.constant 0 : index
      %25 = vector.load %arg7[%c0_18, %c0_19] : memref<128x128xf32, #tpu.memory_space<vmem>>, vector<128x128xf32>
      tpu.vector_store %arg7[%c0_18, %c0_19], %24 {strides = array<i32>} : memref<128x128xf32, #tpu.memory_space<vmem>>, vector<128x128xf32>,
    } else {
    }
    return
  }
  func.func @transform_0(%arg0: i32, %arg1: i32) -> (i32, i32) {
    %c0_i32 = arith.constant 0 : i32
    return %arg0, %arg1 : i32, i32
  }
  func.func @transform_1(%arg0: i32, %arg1: i32) -> (i32, i32) {
    %c0_i32 = arith.constant 0 : i32
    %c0_i32_0 = arith.constant 0 : i32
    %c0_i32_1 = arith.constant 0 : i32
    return %c0_i32, %c0_i32_0 : i32, i32
  }
  func.func @transform_2(%arg0: i32, %arg1: i32) -> (i32, i32) {
    %c0_i32 = arith.constant 0 : i32
    %c0_i32_0 = arith.constant 0 : i32
    return %arg0, %c0_i32 : i32, i32
  }
  func.func @transform_3(%arg0: i32, %arg1: i32) -> (i32, i32) {
    %c0_i32 = arith.constant 0 : i32
    %c0_i32_0 = arith.constant 0 : i32
    %c0_i32_1 = arith.constant 0 : i32
    return %c0_i32, %c0_i32_0 : i32, i32
  }
  func.func @transform_4(%arg0: i32, %arg1: i32) -> (i32, i32) {
    %c0_i32 = arith.constant 0 : i32
    %c0_i32_0 = arith.constant 0 : i32
    %c0_i32_1 = arith.constant 0 : i32
    return %c0_i32, %c0_i32_0 : i32, i32
  }
  func.func @transform_5(%arg0: i32, %arg1: i32) -> (i32, i32) {
    %c0_i32 = arith.constant 0 : i32
    %c0_i32_0 = arith.constant 0 : i32
    return %arg0, %c0_i32 : i32, i32
  }
}

</mosaic_0001>

<llo_original>
// kernel: global_layer.1
$region0: #{global_layer.1}
  #allocation0 [shape = 'u32[]', space=smem, size = 0x4, offset = 0x4, fixed_abs, tag = 'smem constant byte address 0x4 - core index']
  #allocation1 [shape = 'u32[144,128]{1,0:T(1,128)}', space=vmem, size = 0x12000, scoped, tag = 'internal scratch']
  #allocation2 [shape = 'f32[128,128]{1,0:T(8,128)}', space=vmem, size = 0x10000, scoped, tag = 'scratch operand']
  %s0 = inlined_call_operand.vmem [shape: bf16[128,128], index: 0, kind: input, shape index: {}]
  %s1 = inlined_call_operand.vmem [shape: bf16[128,128], index: 1, kind: input, shape index: {}]
  %s2 = inlined_call_operand.vmem [shape: f32[128,1], index: 2, kind: input, shape index: {}]
  %s3 = inlined_call_operand.vmem [shape: bf16[128,128], index: 3, kind: input, shape index: {}]
  %s4 = inlined_call_operand.vmem [shape: f32[1,128], index: 4, kind: input, shape index: {}]
  %s5 = inlined_call_operand.vmem [shape: f32[128,128], index: 5, kind: output, shape index: {}]
  %s6 = sld [smem:[#allocation0]]
  $region38: #{global_layer.1} parent=0
    _
  %s8 = ssub.s32 1, %s6
  %s9 = scalar_select 0, %s8, %s6
  // Predicated region
  $region2: #{global_layer.1} parent=0 // pred_check
    _
  $region3: #{global_layer.1} parent=0 // pred_check_branch
    %11 = sbr.rel (0) target = $region5
  $region4: #{global_layer.1} parent=0 // pred_region
    _
  $region5: #{global_layer.1} parent=0 // pred_fallthru
    _
  // Predicated region
  $region6: #{global_layer.1} parent=0 // pred_check
    _
  $region7: #{global_layer.1} parent=0 // pred_check_branch
    %13 = sbr.rel (0) target = $region9
  $region8: #{global_layer.1} parent=0 // pred_region
    _
  $region9: #{global_layer.1} parent=0 // pred_fallthru
    _
  // Predicated region
  $region10: #{global_layer.1} parent=0 // pred_check
    _
  $region11: #{global_layer.1} parent=0 // pred_check_branch
    %15 = sbr.rel (0) target = $region13
  $region12: #{global_layer.1} parent=0 // pred_region
    _
  $region13: #{global_layer.1} parent=0 // pred_fallthru
    _
  // Predicated region
  $region14: #{global_layer.1} parent=0 // pred_check
    _
  $region15: #{global_layer.1} parent=0 // pred_check_branch
    %17 = sbr.rel (0) target = $region17
  $region16: #{global_layer.1} parent=0 // pred_region
    _
  $region17: #{global_layer.1} parent=0 // pred_fallthru
    _
  // Predicated region
  $region18: #{global_layer.1} parent=0 // pred_check
    _
  $region19: #{global_layer.1} parent=0 // pred_check_branch
    %19 = sbr.rel (0) target = $region21
  $region20: #{global_layer.1} parent=0 // pred_region
    _
  $region21: #{global_layer.1} parent=0 // pred_fallthru
    _
  %p21 = scmp.eq.s32.totalorder 0, 0
  // Predicated region
  $region22: #{global_layer.1} parent=0 // pred_check
    %p22 = pneg %p21
  $region23: #{global_layer.1} parent=0 // pred_check_branch
    %24 = sbr.rel (%p22) target = $region25
  $region24: #{global_layer.1} parent=0 // pred_region
    %25 = vst [vmem:[#allocation2] sm:$0xff] 0.0
    %26 = vst [vmem:[#allocation2 + $0x8] sm:$0xff] 0.0
    %27 = vst [vmem:[#allocation2 + $0x10] sm:$0xff] 0.0
    %28 = vst [vmem:[#allocation2 + $0x18] sm:$0xff] 0.0
    %29 = vst [vmem:[#allocation2 + $0x20] sm:$0xff] 0.0
    %30 = vst [vmem:[#allocation2 + $0x28] sm:$0xff] 0.0
    %31 = vst [vmem:[#allocation2 + $0x30] sm:$0xff] 0.0
    %32 = vst [vmem:[#allocation2 + $0x38] sm:$0xff] 0.0
    %33 = vst [vmem:[#allocation2 + $0x40] sm:$0xff] 0.0
    %34 = vst [vmem:[#allocation2 + $0x48] sm:$0xff] 0.0
    %35 = vst [vmem:[#allocation2 + $0x50] sm:$0xff] 0.0
    %36 = vst [vmem:[#allocation2 + $0x58] sm:$0xff] 0.0
    %37 = vst [vmem:[#allocation2 + $0x60] sm:$0xff] 0.0
    %38 = vst [vmem:[#allocation2 + $0x68] sm:$0xff] 0.0
    %39 = vst [vmem:[#allocation2 + $0x70] sm:$0xff] 0.0
    %40 = vst [vmem:[#allocation2 + $0x78] sm:$0xff] 0.0
  $region25: #{global_layer.1} parent=0 // pred_fallthru
    _
  %s41 = smul.u32 0, 128
  %s42 = sshra.s32 %s41, 3
  %s43 = sand.u32 %s41, 7
  %s44 = smul.addr %s42, 4
  %s45 = scalar_lea.vmem %s1, %s44
  %v46 = vld [vmem:[%s45] sm:$0xf]
  %v47 = vld [vmem:[%s45 + $0x4] sm:$0xf]
  %v48 = vld [vmem:[%s45 + $0x8] sm:$0xf]
  %v49 = vld [vmem:[%s45 + $0xc] sm:$0xf]
  %v50 = vld [vmem:[%s45 + $0x10] sm:$0xf]
  %v51 = vld [vmem:[%s45 + $0x14] sm:$0xf]
  %v52 = vld [vmem:[%s45 + $0x18] sm:$0xf]
  %v53 = vld [vmem:[%s45 + $0x1c] sm:$0xf]
  %v54 = vld [vmem:[%s45 + $0x20] sm:$0xf]
  %v55 = vld [vmem:[%s45 + $0x24] sm:$0xf]
  %v56 = vld [vmem:[%s45 + $0x28] sm:$0xf]
  %v57 = vld [vmem:[%s45 + $0x2c] sm:$0xf]
  %v58 = vld [vmem:[%s45 + $0x30] sm:$0xf]
  %v59 = vld [vmem:[%s45 + $0x34] sm:$0xf]
  %v60 = vld [vmem:[%s45 + $0x38] sm:$0xf]
  %v61 = vld [vmem:[%s45 + $0x3c] sm:$0xf]
  %v62 = vld [vmem:[#allocation2] sm:$0xff]
  %v63 = vld [vmem:[#allocation2 + $0x8] sm:$0xff]
  %v64 = vld [vmem:[#allocation2 + $0x10] sm:$0xff]
  %v65 = vld [vmem:[#allocation2 + $0x18] sm:$0xff]
  %v66 = vld [vmem:[#allocation2 + $0x20] sm:$0xff]
  %v67 = vld [vmem:[#allocation2 + $0x28] sm:$0xff]
  %v68 = vld [vmem:[#allocation2 + $0x30] sm:$0xff]
  %v69 = vld [vmem:[#allocation2 + $0x38] sm:$0xff]
  %v70 = vld [vmem:[#allocation2 + $0x40] sm:$0xff]
  %v71 = vld [vmem:[#allocation2 + $0x48] sm:$0xff]
  %v72 = vld [vmem:[#allocation2 + $0x50] sm:$0xff]
  %v73 = vld [vmem:[#allocation2 + $0x58] sm:$0xff]
  %v74 = vld [vmem:[#allocation2 + $0x60] sm:$0xff]
  %v75 = vld [vmem:[#allocation2 + $0x68] sm:$0xff]
  %v76 = vld [vmem:[#allocation2 + $0x70] sm:$0xff]
  %v77 = vld [vmem:[#allocation2 + $0x78] sm:$0xff]
  %v78 = vld [vmem:[%s0] sm:$0xf]
  %v79 = vld [vmem:[%s0 + $0x4] sm:$0xf]
  %v80 = vld [vmem:[%s0 + $0x8] sm:$0xf]
  %v81 = vld [vmem:[%s0 + $0xc] sm:$0xf]
  %v82 = vld [vmem:[%s0 + $0x10] sm:$0xf]
  %v83 = vld [vmem:[%s0 + $0x14] sm:$0xf]
  %v84 = vld [vmem:[%s0 + $0x18] sm:$0xf]
  %v85 = vld [vmem:[%s0 + $0x1c] sm:$0xf]
  %v86 = vld [vmem:[%s0 + $0x20] sm:$0xf]
  %v87 = vld [vmem:[%s0 + $0x24] sm:$0xf]
  %v88 = vld [vmem:[%s0 + $0x28] sm:$0xf]
  %v89 = vld [vmem:[%s0 + $0x2c] sm:$0xf]
  %v90 = vld [vmem:[%s0 + $0x30] sm:$0xf]
  %v91 = vld [vmem:[%s0 + $0x34] sm:$0xf]
  %v92 = vld [vmem:[%s0 + $0x38] sm:$0xf]
  %v93 = vld [vmem:[%s0 + $0x3c] sm:$0xf]
  %v110 = vunpack.c.l.b16 %v78
  %v111 = vunpack.c.l.b16 %v79
  %v112 = vunpack.c.l.b16 %v80
  %v113 = vunpack.c.l.b16 %v81
  %v114 = vunpack.c.l.b16 %v82
  %v115 = vunpack.c.l.b16 %v83
  %v116 = vunpack.c.l.b16 %v84
  %v117 = vunpack.c.l.b16 %v85
  %v118 = vunpack.c.l.b16 %v86
  %v119 = vunpack.c.l.b16 %v87
  %v120 = vunpack.c.l.b16 %v88
  %v121 = vunpack.c.l.b16 %v89
  %v122 = vunpack.c.l.b16 %v90
  %v123 = vunpack.c.l.b16 %v91
  %v124 = vunpack.c.l.b16 %v92
  %v125 = vunpack.c.l.b16 %v93
  %v126 = vpack.c.b16 %v111, %v110
  %v127 = vpack.c.b16 %v113, %v112
  %v128 = vpack.c.b16 %v115, %v114
  %v129 = vpack.c.b16 %v117, %v116
  %v130 = vpack.c.b16 %v119, %v118
  %v131 = vpack.c.b16 %v121, %v120
  %v132 = vpack.c.b16 %v123, %v122
  %v133 = vpack.c.b16 %v125, %v124
  %v158 = vunpack.c.l.b16 %v46
  %v159 = vunpack.c.l.b16 %v47
  %v160 = vunpack.c.l.b16 %v48
  %v161 = vunpack.c.l.b16 %v49
  %v162 = vunpack.c.l.b16 %v50
  %v163 = vunpack.c.l.b16 %v51
  %v164 = vunpack.c.l.b16 %v52
  %v165 = vunpack.c.l.b16 %v53
  %v166 = vunpack.c.l.b16 %v54
  %v167 = vunpack.c.l.b16 %v55
  %v168 = vunpack.c.l.b16 %v56
  %v169 = vunpack.c.l.b16 %v57
  %v170 = vunpack.c.l.b16 %v58
  %v171 = vunpack.c.l.b16 %v59
  %v172 = vunpack.c.l.b16 %v60
  %v173 = vunpack.c.l.b16 %v61
  %v174 = vpack.c.b16 %v159, %v158
  %v175 = vpack.c.b16 %v161, %v160
  %v176 = vpack.c.b16 %v163, %v162
  %v177 = vpack.c.b16 %v165, %v164
  %v178 = vpack.c.b16 %v167, %v166
  %v179 = vpack.c.b16 %v169, %v168
  %v180 = vpack.c.b16 %v171, %v170
  %v181 = vpack.c.b16 %v173, %v172
  %190 = vmatprep.subr.bf16.mxu0 0
  %191 = vmatpush1.bf16.msra.mxu0 %v181
  %192 = vmatprep.subr.bf16.mxu0 0
  %193 = vmatpush1.bf16.msra.mxu0 %v180
  %194 = vmatprep.subr.bf16.mxu0 0
  %195 = vmatpush1.bf16.msra.mxu0 %v179
  %196 = vmatprep.subr.bf16.mxu0 0
  %197 = vmatpush1.bf16.msra.mxu0 %v178
  %198 = vmatprep.subr.bf16.mxu0 0
  %199 = vmatpush1.bf16.msra.mxu0 %v177
  %200 = vmatprep.subr.bf16.mxu0 0
  %201 = vmatpush1.bf16.msra.mxu0 %v176
  %202 = vmatprep.subr.bf16.mxu0 0
  %203 = vmatpush1.bf16.msra.mxu0 %v175
  %204 = vmatprep.subr.bf16.mxu0 0
  %205 = vmatpush1.bf16.msra.mxu0 %v174
  %206 = vmatprep.subr.bf16.mxu0 0
  %207 = vmatpush2.bf16.msra.mxu0 0
  %208 = vmatprep.subr.bf16.mxu0 0
  %209 = vmatpush2.bf16.msra.mxu0 0
  %210 = vmatprep.subr.bf16.mxu0 0
  %211 = vmatpush2.bf16.msra.mxu0 0
  %212 = vmatprep.subr.bf16.mxu0 0
  %213 = vmatpush2.bf16.msra.mxu0 0
  %214 = vmatprep.subr.bf16.mxu0 0
  %215 = vmatpush2.bf16.msra.mxu0 0
  %216 = vmatprep.subr.bf16.mxu0 0
  %217 = vmatpush2.bf16.msra.mxu0 0
  %218 = vmatprep.subr.bf16.mxu0 0
  %219 = vmatpush2.bf16.msra.mxu0 0
  %220 = vmatprep.subr.bf16.mxu0 0
  %221 = vmatpush2.bf16.msra.mxu0 0
  %222 = vmatprep.mubr.bf16.mxu0 0
  %223 = vmatmul.mubr.bf16.gmra.mxu0 %v126
  %v224 = vpop.f32.mrf.mxu0
  %v225 = vadd.f32 0.0, %v224
  %v226 = vpop.f32.mrf.mxu0
  %v227 = vpop.f32.mrf.mxu0
  %v228 = vadd.f32 0.0, %v227
  %v229 = vpop.f32.mrf.mxu0
  %230 = vmatprep.mubr.bf16.mxu0 0
  %231 = vmatmul.mubr.bf16.gmra.mxu0 %v127
  %v232 = vpop.f32.mrf.mxu0
  %v233 = vadd.f32 0.0, %v232
  %v234 = vpop.f32.mrf.mxu0
  %v235 = vpop.f32.mrf.mxu0
  %v236 = vadd.f32 0.0, %v235
  %v237 = vpop.f32.mrf.mxu0
  %238 = vmatprep.mubr.bf16.mxu0 0
  %239 = vmatmul.mubr.bf16.gmra.mxu0 %v128
  %v240 = vpop.f32.mrf.mxu0
  %v241 = vadd.f32 0.0, %v240
  %v242 = vpop.f32.mrf.mxu0
  %v243 = vpop.f32.mrf.mxu0
  %v244 = vadd.f32 0.0, %v243
  %v245 = vpop.f32.mrf.mxu0
  %246 = vmatprep.mubr.bf16.mxu0 0
  %247 = vmatmul.mubr.bf16.gmra.mxu0 %v129
  %v248 = vpop.f32.mrf.mxu0
  %v249 = vadd.f32 0.0, %v248
  %v250 = vpop.f32.mrf.mxu0
  %v251 = vpop.f32.mrf.mxu0
  %v252 = vadd.f32 0.0, %v251
  %v253 = vpop.f32.mrf.mxu0
  %254 = vmatprep.mubr.bf16.mxu0 0
  %255 = vmatmul.mubr.bf16.gmra.mxu0 %v130
  %v256 = vpop.f32.mrf.mxu0
  %v257 = vadd.f32 0.0, %v256
  %v258 = vpop.f32.mrf.mxu0
  %v259 = vpop.f32.mrf.mxu0
  %v260 = vadd.f32 0.0, %v259
  %v261 = vpop.f32.mrf.mxu0
  %262 = vmatprep.mubr.bf16.mxu0 0
  %263 = vmatmul.mubr.bf16.gmra.mxu0 %v131
  %v264 = vpop.f32.mrf.mxu0
  %v265 = vadd.f32 0.0, %v264
  %v266 = vpop.f32.mrf.mxu0
  %v267 = vpop.f32.mrf.mxu0
  %v268 = vadd.f32 0.0, %v267
  %v269 = vpop.f32.mrf.mxu0
  %270 = vmatprep.mubr.bf16.mxu0 0
  %271 = vmatmul.mubr.bf16.gmra.mxu0 %v132
  %v272 = vpop.f32.mrf.mxu0
  %v273 = vadd.f32 0.0, %v272
  %v274 = vpop.f32.mrf.mxu0
  %v275 = vpop.f32.mrf.mxu0
  %v276 = vadd.f32 0.0, %v275
  %v277 = vpop.f32.mrf.mxu0
  %278 = vmatprep.mubr.bf16.mxu0 0
  %279 = vmatmul.mubr.bf16.gmra.mxu0 %v133
  %v280 = vpop.f32.mrf.mxu0
  %v281 = vadd.f32 0.0, %v280
  %v282 = vpop.f32.mrf.mxu0
  %v283 = vpop.f32.mrf.mxu0
  %v284 = vadd.f32 0.0, %v283
  %v285 = vpop.f32.mrf.mxu0
  %286 = vdwg.mxu0
  %v287 = vadd.f32 %v62, %v225
  %v288 = vadd.f32 %v63, %v228
  %v289 = vadd.f32 %v64, %v233
  %v290 = vadd.f32 %v65, %v236
  %v291 = vadd.f32 %v66, %v241
  %v292 = vadd.f32 %v67, %v244
  %v293 = vadd.f32 %v68, %v249
  %v294 = vadd.f32 %v69, %v252
  %v295 = vadd.f32 %v70, %v257
  %v296 = vadd.f32 %v71, %v260
  %v297 = vadd.f32 %v72, %v265
  %v298 = vadd.f32 %v73, %v268
  %v299 = vadd.f32 %v74, %v273
  %v300 = vadd.f32 %v75, %v276
  %v301 = vadd.f32 %v76, %v281
  %v302 = vadd.f32 %v77, %v284
  %303 = vst [vmem:[#allocation2] sm:$0xff] %v287
  %304 = vst [vmem:[#allocation2 + $0x8] sm:$0xff] %v288
  %305 = vst [vmem:[#allocation2 + $0x10] sm:$0xff] %v289
  %306 = vst [vmem:[#allocation2 + $0x18] sm:$0xff] %v290
  %307 = vst [vmem:[#allocation2 + $0x20] sm:$0xff] %v291
  %308 = vst [vmem:[#allocation2 + $0x28] sm:$0xff] %v292
  %309 = vst [vmem:[#allocation2 + $0x30] sm:$0xff] %v293
  %310 = vst [vmem:[#allocation2 + $0x38] sm:$0xff] %v294
  %311 = vst [vmem:[#allocation2 + $0x40] sm:$0xff] %v295
  %312 = vst [vmem:[#allocation2 + $0x48] sm:$0xff] %v296
  %313 = vst [vmem:[#allocation2 + $0x50] sm:$0xff] %v297
  %314 = vst [vmem:[#allocation2 + $0x58] sm:$0xff] %v298
  %315 = vst [vmem:[#allocation2 + $0x60] sm:$0xff] %v299
  %316 = vst [vmem:[#allocation2 + $0x68] sm:$0xff] %v300
  %317 = vst [vmem:[#allocation2 + $0x70] sm:$0xff] %v301
  %318 = vst [vmem:[#allocation2 + $0x78] sm:$0xff] %v302
  // Predicated region
  $region26: #{global_layer.1} parent=0 // pred_check
    %p319 = pneg %p21
  $region27: #{global_layer.1} parent=0 // pred_check_branch
    %321 = sbr.rel (%p319) target = $region29
  $region28: #{global_layer.1} parent=0 // pred_region
    %v322 = vld [vmem:[#allocation2] sm:$0xff]
    %v323 = vld [vmem:[#allocation2 + $0x8] sm:$0xff]
    %v324 = vld [vmem:[#allocation2 + $0x10] sm:$0xff]
    %v325 = vld [vmem:[#allocation2 + $0x18] sm:$0xff]
    %v326 = vld [vmem:[#allocation2 + $0x20] sm:$0xff]
    %v327 = vld [vmem:[#allocation2 + $0x28] sm:$0xff]
    %v328 = vld [vmem:[#allocation2 + $0x30] sm:$0xff]
    %v329 = vld [vmem:[#allocation2 + $0x38] sm:$0xff]
    %v330 = vld [vmem:[#allocation2 + $0x40] sm:$0xff]
    %v331 = vld [vmem:[#allocation2 + $0x48] sm:$0xff]
    %v332 = vld [vmem:[#allocation2 + $0x50] sm:$0xff]
    %v333 = vld [vmem:[#allocation2 + $0x58] sm:$0xff]
    %v334 = vld [vmem:[#allocation2 + $0x60] sm:$0xff]
    %v335 = vld [vmem:[#allocation2 + $0x68] sm:$0xff]
    %v336 = vld [vmem:[#allocation2 + $0x70] sm:$0xff]
    %v337 = vld [vmem:[#allocation2 + $0x78] sm:$0xff]
    %v338 = vld [vmem:[%s2] sm:$0xff]
    %v339 = vld [vmem:[%s2 + $0x8] sm:$0xff]
    %v340 = vld [vmem:[%s2 + $0x10] sm:$0xff]
    %v341 = vld [vmem:[%s2 + $0x18] sm:$0xff]
    %v342 = vld [vmem:[%s2 + $0x20] sm:$0xff]
    %v343 = vld [vmem:[%s2 + $0x28] sm:$0xff]
    %v344 = vld [vmem:[%s2 + $0x30] sm:$0xff]
    %v345 = vld [vmem:[%s2 + $0x38] sm:$0xff]
    %v346 = vld [vmem:[%s2 + $0x40] sm:$0xff]
    %v347 = vld [vmem:[%s2 + $0x48] sm:$0xff]
    %v348 = vld [vmem:[%s2 + $0x50] sm:$0xff]
    %v349 = vld [vmem:[%s2 + $0x58] sm:$0xff]
    %v350 = vld [vmem:[%s2 + $0x60] sm:$0xff]
    %v351 = vld [vmem:[%s2 + $0x68] sm:$0xff]
    %v352 = vld [vmem:[%s2 + $0x70] sm:$0xff]
    %v353 = vld [vmem:[%s2 + $0x78] sm:$0xff]
    %355 = vset.pattern.permute.xlu0 0
    %356 = vperm.xlu0 %355, %v338
    %v357 = vpop.permute.xlu0 %356
    %360 = vset.pattern.permute.xlu0 0
    %361 = vperm.xlu0 %360, %v339
    %v362 = vpop.permute.xlu0 %361
    %365 = vset.pattern.permute.xlu0 0
    %366 = vperm.xlu0 %365, %v340
    %v367 = vpop.permute.xlu0 %366
    %370 = vset.pattern.permute.xlu0 0
    %371 = vperm.xlu0 %370, %v341
    %v372 = vpop.permute.xlu0 %371
    %375 = vset.pattern.permute.xlu0 0
    %376 = vperm.xlu0 %375, %v342
    %v377 = vpop.permute.xlu0 %376
    %380 = vset.pattern.permute.xlu0 0
    %381 = vperm.xlu0 %380, %v343
    %v382 = vpop.permute.xlu0 %381
    %385 = vset.pattern.permute.xlu0 0
    %386 = vperm.xlu0 %385, %v344
    %v387 = vpop.permute.xlu0 %386
    %390 = vset.pattern.permute.xlu0 0
    %391 = vperm.xlu0 %390, %v345
    %v392 = vpop.permute.xlu0 %391
    %395 = vset.pattern.permute.xlu0 0
    %396 = vperm.xlu0 %395, %v346
    %v397 = vpop.permute.xlu0 %396
    %400 = vset.pattern.permute.xlu0 0
    %401 = vperm.xlu0 %400, %v347
    %v402 = vpop.permute.xlu0 %401
    %405 = vset.pattern.permute.xlu0 0
    %406 = vperm.xlu0 %405, %v348
    %v407 = vpop.permute.xlu0 %406
    %410 = vset.pattern.permute.xlu0 0
    %411 = vperm.xlu0 %410, %v349
    %v412 = vpop.permute.xlu0 %411
    %415 = vset.pattern.permute.xlu0 0
    %416 = vperm.xlu0 %415, %v350
    %v417 = vpop.permute.xlu0 %416
    %420 = vset.pattern.permute.xlu0 0
    %421 = vperm.xlu0 %420, %v351
    %v422 = vpop.permute.xlu0 %421
    %425 = vset.pattern.permute.xlu0 0
    %426 = vperm.xlu0 %425, %v352
    %v427 = vpop.permute.xlu0 %426
    %430 = vset.pattern.permute.xlu0 0
    %431 = vperm.xlu0 %430, %v353
    %v432 = vpop.permute.xlu0 %431
    %v434 = vmul.f32 %v322, %v357
    %v435 = vmul.f32 %v323, %v362
    %v436 = vmul.f32 %v324, %v367
    %v437 = vmul.f32 %v325, %v372
    %v438 = vmul.f32 %v326, %v377
    %v439 = vmul.f32 %v327, %v382
    %v440 = vmul.f32 %v328, %v387
    %v441 = vmul.f32 %v329, %v392
    %v442 = vmul.f32 %v330, %v397
    %v443 = vmul.f32 %v331, %v402
    %v444 = vmul.f32 %v332, %v407
    %v445 = vmul.f32 %v333, %v412
    %v446 = vmul.f32 %v334, %v417
    %v447 = vmul.f32 %v335, %v422
    %v448 = vmul.f32 %v336, %v427
    %v449 = vmul.f32 %v337, %v432
    %v450 = vpack.c.bf16 %v435, %v434
    %v451 = vpack.c.bf16 %v437, %v436
    %v452 = vpack.c.bf16 %v439, %v438
    %v453 = vpack.c.bf16 %v441, %v440
    %v454 = vpack.c.bf16 %v443, %v442
    %v455 = vpack.c.bf16 %v445, %v444
    %v456 = vpack.c.bf16 %v447, %v446
    %v457 = vpack.c.bf16 %v449, %v448
    %v458 = vld [vmem:[%s3] sm:$0xf]
    %v459 = vld [vmem:[%s3 + $0x4] sm:$0xf]
    %v460 = vld [vmem:[%s3 + $0x8] sm:$0xf]
    %v461 = vld [vmem:[%s3 + $0xc] sm:$0xf]
    %v462 = vld [vmem:[%s3 + $0x10] sm:$0xf]
    %v463 = vld [vmem:[%s3 + $0x14] sm:$0xf]
    %v464 = vld [vmem:[%s3 + $0x18] sm:$0xf]
    %v465 = vld [vmem:[%s3 + $0x1c] sm:$0xf]
    %v466 = vld [vmem:[%s3 + $0x20] sm:$0xf]
    %v467 = vld [vmem:[%s3 + $0x24] sm:$0xf]
    %v468 = vld [vmem:[%s3 + $0x28] sm:$0xf]
    %v469 = vld [vmem:[%s3 + $0x2c] sm:$0xf]
    %v470 = vld [vmem:[%s3 + $0x30] sm:$0xf]
    %v471 = vld [vmem:[%s3 + $0x34] sm:$0xf]
    %v472 = vld [vmem:[%s3 + $0x38] sm:$0xf]
    %v473 = vld [vmem:[%s3 + $0x3c] sm:$0xf]
    %v474 = vld [vmem:[%s4] sm:$0x1]
    %v476 = vlaneseq
    %v477 = vshrl.u32 %v476, 7
    %v478 = vsub.s32 0, %v477
    %v479 = vrot.slane %v474, %v478
    %v497 = vunpack.c.l.b16 %v458
    %v498 = vunpack.c.l.b16 %v459
    %v499 = vunpack.c.l.b16 %v460
    %v500 = vunpack.c.l.b16 %v461
    %v501 = vunpack.c.l.b16 %v462
    %v502 = vunpack.c.l.b16 %v463
    %v503 = vunpack.c.l.b16 %v464
    %v504 = vunpack.c.l.b16 %v465
    %v505 = vunpack.c.l.b16 %v466
    %v506 = vunpack.c.l.b16 %v467
    %v507 = vunpack.c.l.b16 %v468
    %v508 = vunpack.c.l.b16 %v469
    %v509 = vunpack.c.l.b16 %v470
    %v510 = vunpack.c.l.b16 %v471
    %v511 = vunpack.c.l.b16 %v472
    %v512 = vunpack.c.l.b16 %v473
    %v513 = vpack.c.b16 %v498, %v497
    %v514 = vpack.c.b16 %v500, %v499
    %v515 = vpack.c.b16 %v502, %v501
    %v516 = vpack.c.b16 %v504, %v503
    %v517 = vpack.c.b16 %v506, %v505
    %v518 = vpack.c.b16 %v508, %v507
    %v519 = vpack.c.b16 %v510, %v509
    %v520 = vpack.c.b16 %v512, %v511
    %529 = vmatprep.subr.bf16.mxu0 0
    %530 = vmatpush1.bf16.msra.mxu0 %v520
    %531 = vmatprep.subr.bf16.mxu0 0
    %532 = vmatpush1.bf16.msra.mxu0 %v519
    %533 = vmatprep.subr.bf16.mxu0 0
    %534 = vmatpush1.bf16.msra.mxu0 %v518
    %535 = vmatprep.subr.bf16.mxu0 0
    %536 = vmatpush1.bf16.msra.mxu0 %v517
    %537 = vmatprep.subr.bf16.mxu0 0
    %538 = vmatpush1.bf16.msra.mxu0 %v516
    %539 = vmatprep.subr.bf16.mxu0 0
    %540 = vmatpush1.bf16.msra.mxu0 %v515
    %541 = vmatprep.subr.bf16.mxu0 0
    %542 = vmatpush1.bf16.msra.mxu0 %v514
    %543 = vmatprep.subr.bf16.mxu0 0
    %544 = vmatpush1.bf16.msra.mxu0 %v513
    %545 = vmatprep.subr.bf16.mxu0 0
    %546 = vmatpush2.bf16.msra.mxu0 0
    %547 = vmatprep.subr.bf16.mxu0 0
    %548 = vmatpush2.bf16.msra.mxu0 0
    %549 = vmatprep.subr.bf16.mxu0 0
    %550 = vmatpush2.bf16.msra.mxu0 0
    %551 = vmatprep.subr.bf16.mxu0 0
    %552 = vmatpush2.bf16.msra.mxu0 0
    %553 = vmatprep.subr.bf16.mxu0 0
    %554 = vmatpush2.bf16.msra.mxu0 0
    %555 = vmatprep.subr.bf16.mxu0 0
    %556 = vmatpush2.bf16.msra.mxu0 0
    %557 = vmatprep.subr.bf16.mxu0 0
    %558 = vmatpush2.bf16.msra.mxu0 0
    %559 = vmatprep.subr.bf16.mxu0 0
    %560 = vmatpush2.bf16.msra.mxu0 0
    %561 = vmatprep.mubr.bf16.mxu0 0
    %562 = vmatmul.mubr.bf16.gmra.mxu0 %v450
    %v563 = vpop.f32.mrf.mxu0
    %v564 = vadd.f32 %v479, %v563
    %v565 = vpop.f32.mrf.mxu0
    %v566 = vpop.f32.mrf.mxu0
    %v567 = vadd.f32 %v479, %v566
    %v568 = vpop.f32.mrf.mxu0
    %569 = vmatprep.mubr.bf16.mxu0 0
    %570 = vmatmul.mubr.bf16.gmra.mxu0 %v451
    %v571 = vpop.f32.mrf.mxu0
    %v572 = vadd.f32 %v479, %v571
    %v573 = vpop.f32.mrf.mxu0
    %v574 = vpop.f32.mrf.mxu0
    %v575 = vadd.f32 %v479, %v574
    %v576 = vpop.f32.mrf.mxu0
    %577 = vmatprep.mubr.bf16.mxu0 0
    %578 = vmatmul.mubr.bf16.gmra.mxu0 %v452
    %v579 = vpop.f32.mrf.mxu0
    %v580 = vadd.f32 %v479, %v579
    %v581 = vpop.f32.mrf.mxu0
    %v582 = vpop.f32.mrf.mxu0
    %v583 = vadd.f32 %v479, %v582
    %v584 = vpop.f32.mrf.mxu0
    %585 = vmatprep.mubr.bf16.mxu0 0
    %586 = vmatmul.mubr.bf16.gmra.mxu0 %v453
    %v587 = vpop.f32.mrf.mxu0
    %v588 = vadd.f32 %v479, %v587
    %v589 = vpop.f32.mrf.mxu0
    %v590 = vpop.f32.mrf.mxu0
    %v591 = vadd.f32 %v479, %v590
    %v592 = vpop.f32.mrf.mxu0
    %593 = vmatprep.mubr.bf16.mxu0 0
    %594 = vmatmul.mubr.bf16.gmra.mxu0 %v454
    %v595 = vpop.f32.mrf.mxu0
    %v596 = vadd.f32 %v479, %v595
    %v597 = vpop.f32.mrf.mxu0
    %v598 = vpop.f32.mrf.mxu0
    %v599 = vadd.f32 %v479, %v598
    %v600 = vpop.f32.mrf.mxu0
    %601 = vmatprep.mubr.bf16.mxu0 0
    %602 = vmatmul.mubr.bf16.gmra.mxu0 %v455
    %v603 = vpop.f32.mrf.mxu0
    %v604 = vadd.f32 %v479, %v603
    %v605 = vpop.f32.mrf.mxu0
    %v606 = vpop.f32.mrf.mxu0
    %v607 = vadd.f32 %v479, %v606
    %v608 = vpop.f32.mrf.mxu0
    %609 = vmatprep.mubr.bf16.mxu0 0
    %610 = vmatmul.mubr.bf16.gmra.mxu0 %v456
    %v611 = vpop.f32.mrf.mxu0
    %v612 = vadd.f32 %v479, %v611
    %v613 = vpop.f32.mrf.mxu0
    %v614 = vpop.f32.mrf.mxu0
    %v615 = vadd.f32 %v479, %v614
    %v616 = vpop.f32.mrf.mxu0
    %617 = vmatprep.mubr.bf16.mxu0 0
    %618 = vmatmul.mubr.bf16.gmra.mxu0 %v457
    %v619 = vpop.f32.mrf.mxu0
    %v620 = vadd.f32 %v479, %v619
    %v621 = vpop.f32.mrf.mxu0
    %v622 = vpop.f32.mrf.mxu0
    %v623 = vadd.f32 %v479, %v622
    %v624 = vpop.f32.mrf.mxu0
    %625 = vdwg.mxu0
    %626 = vst [vmem:[%s5] sm:$0xff] %v564
    %627 = vst [vmem:[%s5 + $0x8] sm:$0xff] %v567
    %628 = vst [vmem:[%s5 + $0x10] sm:$0xff] %v572
    %629 = vst [vmem:[%s5 + $0x18] sm:$0xff] %v575
    %630 = vst [vmem:[%s5 + $0x20] sm:$0xff] %v580
    %631 = vst [vmem:[%s5 + $0x28] sm:$0xff] %v583
    %632 = vst [vmem:[%s5 + $0x30] sm:$0xff] %v588
    %633 = vst [vmem:[%s5 + $0x38] sm:$0xff] %v591
    %634 = vst [vmem:[%s5 + $0x40] sm:$0xff] %v596
    %635 = vst [vmem:[%s5 + $0x48] sm:$0xff] %v599
    %636 = vst [vmem:[%s5 + $0x50] sm:$0xff] %v604
    %637 = vst [vmem:[%s5 + $0x58] sm:$0xff] %v607
    %638 = vst [vmem:[%s5 + $0x60] sm:$0xff] %v612
    %639 = vst [vmem:[%s5 + $0x68] sm:$0xff] %v615
    %640 = vst [vmem:[%s5 + $0x70] sm:$0xff] %v620
    %641 = vst [vmem:[%s5 + $0x78] sm:$0xff] %v623
  $region29: #{global_layer.1} parent=0 // pred_fallthru
    _
  // Predicated region
  $region30: #{global_layer.1} parent=0 // pred_check
    _
  $region31: #{global_layer.1} parent=0 // pred_check_branch
    %643 = sbr.rel (0) target = $region33
  $region32: #{global_layer.1} parent=0 // pred_region
    _
  $region33: #{global_layer.1} parent=0 // pred_fallthru
    _
  // Predicated region
  $region34: #{global_layer.1} parent=0 // pred_check
    _
  $region35: #{global_layer.1} parent=0 // pred_check_branch
    %645 = sbr.rel (0) target = $region37
  $region36: #{global_layer.1} parent=0 // pred_region
    _
  $region37: #{global_layer.1} parent=0 // pred_fallthru
    _

</llo_original>
